<compile_context>
chip_gen: v6e
topology: v6e:2x2x1
jax: 0.10.0
libtpu: 0.0.40
codegen_flags: <defaults>
</compile_context>

<pallas_src>
import functools

import jax
import jax.numpy as jnp
from jax.experimental import pallas as pl
from jax.experimental.pallas import tpu as pltpu


def _round_up(x, m):
    return ((x + m - 1) // m) * m


def _inv_func_mapping_kernel_c2(x_ref, o_ref, *, inv_a):
    # x_ref/o_ref: (N, 2, TM). For C == 2 both output channels are
    #   R = (1/softmax_ch1 - 1)/a = (e0/e1)/a = exp(x0 - x1) * inv_a.
    x = x_ref[...].astype(jnp.float32)           # (N, 2, TM)
    r = jnp.exp(x[:, 0, :] - x[:, 1, :]) * inv_a  # (N, TM)
    r = jnp.where(r == 0.0, 1e-8, r)
    r = jnp.broadcast_to(r[:, None, :], o_ref.shape)
    o_ref[...] = r.astype(o_ref.dtype)


def _inv_func_mapping_kernel_general(x_ref, o_ref, *, inv_a):
    # x_ref/o_ref: (N, C, TM), C > 2. Softmax over axis 1 (channels).
    x = x_ref[...].astype(jnp.float32)           # (N, C, TM)
    mx = jnp.max(x, axis=1, keepdims=True)
    e = jnp.exp(x - mx)
    s = jnp.sum(e, axis=1, keepdims=True)

    # Channels 0 and 1: vis_mod = 1 - softmax_ch1 -> R = (s - e1)/e1 * inv_a.
    e1 = e[:, 1:2, :]
    r01 = (s - e1) / e1 * inv_a                  # (N, 1, TM)
    r01 = jnp.where(r01 == 0.0, 1e-8, r01).astype(o_ref.dtype)

    # Channels >= 2: vis = softmax -> R = e/(s - e) * inv_a.
    e_hi = e[:, 2:, :]
    r_hi = e_hi / (s - e_hi) * inv_a             # (N, C-2, TM)
    r_hi = jnp.where(r_hi == 0.0, 1e-8, r_hi).astype(o_ref.dtype)

    o_ref[:, 0:1, :] = r01
    o_ref[:, 1:2, :] = r01
    o_ref[:, 2:, :] = r_hi


def inv_func_mapping(uncert, thre=0.9, tile_m=8192):
    """uncert: (N, C, H, W) float array. Returns R with the same shape/dtype."""
    a = 1.0 / (1.0 - thre) - 1.0
    inv_a = 1.0 / a
    n, c, h, w = uncert.shape
    assert c >= 2, "module assumes at least 2 channels (indices 0 and 1)"

    m = h * w
    # Pure reshape only (no HBM transpose round trips): channels stay on axis 1.
    x = uncert.reshape(n, c, m)

    # Tile the H*W (lane) axis. Cap so one block stays ~<=2 MiB of VMEM even after
    # sublane padding of small C (double-buffered in+out <= ~8 MiB -> fits the scoped
    # VMEM default on v5e/v6e/v7x without vmem_limit_bytes).
    itemsize = jnp.dtype(uncert.dtype).itemsize
    bytes_per_col = n * _round_up(c, 8) * itemsize
    vmem_cap_cols = max(128, ((2 * 1024 * 1024) // bytes_per_col) // 128 * 128)

    m_pad = _round_up(m, 128)
    tile = min(_round_up(tile_m, 128), vmem_cap_cols, m_pad)
    while m_pad % tile:  # largest lane-aligned tile that divides the padded extent
        tile -= 128

    if m_pad != m:
        x = jnp.pad(x, ((0, 0), (0, 0), (0, m_pad - m)))

    body = _inv_func_mapping_kernel_c2 if c == 2 else _inv_func_mapping_kernel_general
    kernel = functools.partial(body, inv_a=inv_a)

    out = pl.pallas_call(
        kernel,
        out_shape=jax.ShapeDtypeStruct((n, c, m_pad), uncert.dtype),
        grid=(m_pad // tile,),
        in_specs=[pl.BlockSpec((n, c, tile), lambda i: (0, 0, i))],
        out_specs=pl.BlockSpec((n, c, tile), lambda i: (0, 0, i)),
        compiler_params=pltpu.CompilerParams(
            dimension_semantics=("parallel",)),
    )(x)

    if m_pad != m:
        out = out[:, :, :m]
    return out.reshape(n, c, h, w)


def _reference(uncert, thre=0.9):
    """Plain-JAX reference replicating the PyTorch forward exactly."""
    a = 1.0 / (1.0 - thre) - 1.0
    vis = jax.nn.softmax(uncert, axis=1)
    v1 = vis[:, 1:2]
    vis = vis.at[:, 0:1].set(1.0 - v1)
    vis = vis.at[:, 1:2].set(1.0 - v1)
    r = (1.0 / (1.0 - vis) - 1.0) / a
    r = jnp.where(r == 0.0, r + 1e-8, r)
    return r


if __name__ == "__main__":
    key = jax.random.PRNGKey(0)
    k1, k2 = jax.random.split(key)

    # Primary case: NCHW with the 2 uncertainty channels the module targets (fast path).
    n, c, h, w = 2, 2, 16, 16
    uncert = jax.random.normal(k1, (n, c, h, w), dtype=jnp.float32)
    out = jax.block_until_ready(inv_func_mapping(uncert, thre=0.9))
    ref = _reference(uncert, thre=0.9)
    assert out.shape == (n, c, h, w)
    assert jnp.allclose(out, ref, rtol=1e-5, atol=1e-6), "mismatch vs reference (C=2)"

    # General-C path (channels >= 2 keep their softmax value).
    n2, c2, h2, w2 = 2, 4, 16, 16
    uncert2 = jax.random.normal(k2, (n2, c2, h2, w2), dtype=jnp.float32)
    out2 = jax.block_until_ready(inv_func_mapping(uncert2, thre=0.9))
    ref2 = _reference(uncert2, thre=0.9)
    assert out2.shape == (n2, c2, h2, w2)
    assert jnp.allclose(out2, ref2, rtol=1e-4, atol=1e-6), "mismatch vs reference (C=4)"

    print("KERNEL_OK")
</pallas_src>

<mosaic_0001>
module attributes {stable_mosaic.version = 11 : i64} {
  func.func @_inv_func_mapping_kernel_c2(%arg0: i32, %arg1: memref<2x2x256xf32, #tpu.memory_space<vmem>>, %arg2: memref<2x2x256xf32, #tpu.memory_space<vmem>>) attributes {dimension_semantics = [#tpu.dimension_semantics<parallel>], iteration_bounds = array<i64: 1>, scalar_prefetch = 0 : i64, scratch_operands = 0 : i64, tpu.core_type = #tpu.core_type<tc>, window_params = [{transform_indices = @transform_0, window_bounds = array<i64: 2, 2, 256>}, {transform_indices = @transform_1, window_bounds = array<i64: 2, 2, 256>}]} {
    %c0 = arith.constant 0 : index
    %c0_0 = arith.constant 0 : index
    %c0_1 = arith.constant 0 : index
    %0 = vector.load %arg1[%c0, %c0_0, %c0_1] : memref<2x2x256xf32, #tpu.memory_space<vmem>>, vector<2x2x256xf32>
    %1 = vector.extract_strided_slice %0 {offsets = [0, 0, 0], sizes = [2, 1, 256], strides = [1, 1, 1]} : vector<2x2x256xf32> to vector<2x1x256xf32>
    %2 = vector.shape_cast %1 : vector<2x1x256xf32> to vector<2x256xf32>
    %3 = vector.extract_strided_slice %0 {offsets = [0, 1, 0], sizes = [2, 1, 256], strides = [1, 1, 1]} : vector<2x2x256xf32> to vector<2x1x256xf32>
    %4 = vector.shape_cast %3 : vector<2x1x256xf32> to vector<2x256xf32>
    %5 = arith.subf %2, %4 : vector<2x256xf32>
    %6 = math.exp %5 : vector<2x256xf32>
    %cst = arith.constant 0.111111112 : f32
    %7 = vector.broadcast %cst : f32 to vector<2x256xf32>
    %8 = arith.mulf %6, %7 : vector<2x256xf32>
    %cst_2 = arith.constant 0.000000e+00 : f32
    %9 = vector.broadcast %cst_2 : f32 to vector<2x256xf32>
    %10 = arith.cmpf oeq, %8, %9 : vector<2x256xf32>
    %cst_3 = arith.constant 9.99999993E-9 : f32
    %11 = vector.broadcast %cst_3 : f32 to vector<2x256xf32>
    %12 = arith.select %10, %11, %8 : vector<2x256xi1>, vector<2x256xf32>
    %13 = vector.shape_cast %12 : vector<2x256xf32> to vector<2x1x256xf32>
    %14 = vector.shape_cast %13 : vector<2x1x256xf32> to vector<2x1x256xf32>
    %15 = vector.broadcast %14 : vector<2x1x256xf32> to vector<2x2x256xf32>
    %c0_4 = arith.constant 0 : index
    %c0_5 = arith.constant 0 : index
    %c0_6 = arith.constant 0 : index
    %16 = vector.load %arg2[%c0_4, %c0_5, %c0_6] : memref<2x2x256xf32, #tpu.memory_space<vmem>>, vector<2x2x256xf32>
    tpu.vector_store %arg2[%c0_4, %c0_5, %c0_6], %15 {strides = array<i32>} : memref<2x2x256xf32, #tpu.memory_space<vmem>>, vector<2x2x256xf32>,
    return
  }
  func.func @transform_0(%arg0: i32) -> (i32, i32, i32) {
    %c0_i32 = arith.constant 0 : i32
    %c0_i32_0 = arith.constant 0 : i32
    %c0_i32_1 = arith.constant 0 : i32
    return %c0_i32, %c0_i32_0, %arg0 : i32, i32, i32
  }
  func.func @transform_1(%arg0: i32) -> (i32, i32, i32) {
    %c0_i32 = arith.constant 0 : i32
    %c0_i32_0 = arith.constant 0 : i32
    %c0_i32_1 = arith.constant 0 : i32
    return %c0_i32, %c0_i32_0, %arg0 : i32, i32, i32
  }
}

</mosaic_0001>

<llo_original>
// kernel: tpu_custom_call.1
$region0: #{tpu_custom_call.1}
  #allocation0 [shape = 'u32[]', space=smem, size = 0x4, offset = 0x4, fixed_abs, tag = 'smem constant byte address 0x4 - core index']
  #allocation1 [shape = 'u32[144,128]{1,0:T(1,128)}', space=vmem, size = 0x12000, scoped, tag = 'internal scratch']
  %s0 = inlined_call_operand.hbm [shape: f32[2,2,256], index: 0, kind: input, shape index: {}]
  %s1 = inlined_call_operand.hbm [shape: f32[2,2,256], index: 1, kind: output, shape index: {}]
  %s2 = sld [smem:[#allocation0]]
  $region18: #{tpu_custom_call.1} parent=0
    _
  %s4 = ssub.s32 1, %s2
  %s5 = scalar_select 0, %s4, %s2
  $region1: #{tpu_custom_call.1} parent=0
    #allocation2 [shape = 'u8[4096]{0}', space=vmem, size = 0x1000, scoped, tag = 'input window, operand 0, single buffered']
    #allocation3 [shape = 's32[1]{0}', space=sflag, size = 0x4, scoped, tag = 'scoped memory for tpu_custom_call.1']
    #allocation4 [shape = 's32[1]{0}', space=sflag, size = 0x4, scoped, tag = 'scoped memory for tpu_custom_call.1']
    #allocation5 [shape = 'u8[4096]{0}', space=vmem, size = 0x1000, scoped, tag = 'output window, operand 0, single buffered']
    %6 = vsyncpa [#allocation3], 0
    %7 = vsyncpa [#allocation4], 0
    // Predicated region
    $region2: #{tpu_custom_call.1} parent=1 // pred_check
      _
    $region3: #{tpu_custom_call.1} parent=1 // pred_check_branch
      %9 = sbr.rel (0) target = $region5
    $region4: #{tpu_custom_call.1} parent=1 // pred_region
      %s11 = ssub.s32 128, 128
      %12 = vsyncadd [#allocation3], %s11
      %s13 = sshll.u32 [#allocation2], 4
      %s14 = int_to_ptr.vmem [resolvable:$true] %s13
      %19 = dma.hbm_to_vmem [thread:$0]  %s0, 128, %s14, [#allocation3], 64, 64, 4
    $region5: #{tpu_custom_call.1} parent=1 // pred_fallthru
      _
    // Predicated region
    $region6: #{tpu_custom_call.1} parent=1 // pred_check
      _
    $region7: #{tpu_custom_call.1} parent=1 // pred_check_branch
      %21 = sbr.rel (0) target = $region9
    $region8: #{tpu_custom_call.1} parent=1 // pred_region
      %22 = dma.done [#allocation3], 128
    $region9: #{tpu_custom_call.1} parent=1 // pred_fallthru
      _
    %v23 = vld [vmem:[#allocation2] sm:$0xf]
    %v24 = vld [vmem:[#allocation2 + $0x4] sm:$0xf]
    %v27 = vrot.slane %v23, 7
    %v28 = vrot.slane %v27, 2
    %v29 = vrot.slane %v24, 7
    %v30 = vrot.slane %v29, 2
    %v33 = vsub.f32 %v23, %v28
    %v34 = vsub.f32 %v24, %v30
    %v35 = vmul.f32 %v33, 1.442695
    %v36 = vpow.pop %v35
    %v37 = vmul.f32 %v34, 1.442695
    %v38 = vpow.pop %v37
    %v39 = vmul.f32 %v36, 0.11111111
    %v40 = vmul.f32 %v38, 0.11111111
    %vm41 = vcmp.eq.f32.partialorder %v39, 0.0
    %vm42 = vcmp.eq.f32.partialorder %v40, 0.0
    %v43 = vsel %vm41, 1e-08, %v39
    %v44 = vsel %vm42, 1e-08, %v40
    %v47 = vlaneseq
    %v48 = vshrl.u32 %v47, 7
    %v49 = vsub.s32 0, %v48
    %v50 = vrot.slane %v43, %v49
    %v51 = vlaneseq
    %v52 = vshrl.u32 %v51, 7
    %v53 = vsub.s32 2, %v52
    %v54 = vrot.slane %v43, %v53
    %v55 = vlaneseq
    %v56 = vshrl.u32 %v55, 7
    %v57 = vsub.s32 0, %v56
    %v58 = vrot.slane %v44, %v57
    %v59 = vlaneseq
    %v60 = vshrl.u32 %v59, 7
    %v61 = vsub.s32 2, %v60
    %v62 = vrot.slane %v44, %v61
    %v67 = vlaneseq
    %v68 = vshrl.u32 %v67, 7
    %v69 = vsub.s32 0, %v68
    %v70 = vrot.slane %v50, %v69
    %v71 = vlaneseq
    %v72 = vshrl.u32 %v71, 7
    %v73 = vsub.s32 0, %v72
    %v74 = vrot.slane %v54, %v73
    %v75 = vlaneseq
    %v76 = vshrl.u32 %v75, 7
    %v77 = vsub.s32 0, %v76
    %v78 = vrot.slane %v58, %v77
    %v79 = vlaneseq
    %v80 = vshrl.u32 %v79, 7
    %v81 = vsub.s32 0, %v80
    %v82 = vrot.slane %v62, %v81
    %v87 = vcombine.low %v70, %v74
    %v89 = vunpack.c.l.s4 1983009808
    %v90 = vunpack.c.0.s8 %v89
    %v91 = vlaneseq
    %v92 = vshrl.u32 %v91, 7
    %v93 = vsub.s32 %v90, %v92
    %v94 = vrot.slane %v87, %v93
    %v95 = vcombine.low %v78, %v82
    %v97 = vunpack.c.l.s4 1983009808
    %v98 = vunpack.c.0.s8 %v97
    %v99 = vlaneseq
    %v100 = vshrl.u32 %v99, 7
    %v101 = vsub.s32 %v98, %v100
    %v102 = vrot.slane %v95, %v101
    %105 = vst [vmem:[#allocation5] sm:$0xf] %v94
    %106 = vst [vmem:[#allocation5 + $0x4] sm:$0xf] %v102
    // Predicated region
    $region10: #{tpu_custom_call.1} parent=1 // pred_check
      _
    $region11: #{tpu_custom_call.1} parent=1 // pred_check_branch
      %108 = sbr.rel (0) target = $region13
    $region12: #{tpu_custom_call.1} parent=1 // pred_region
      %s110 = ssub.s32 128, 128
      %111 = vsyncadd [#allocation4], %s110
      %s112 = sshll.u32 [#allocation5], 4
      %s113 = int_to_ptr.vmem [resolvable:$true] %s112
      %118 = dma.vmem_to_hbm [thread:$0]  %s113, 128, %s1, [#allocation4], 64, 64, 4
    $region13: #{tpu_custom_call.1} parent=1 // pred_fallthru
      _
    // Predicated region
    $region14: #{tpu_custom_call.1} parent=1 // pred_check
      _
    $region15: #{tpu_custom_call.1} parent=1 // pred_check_branch
      %120 = sbr.rel (0) target = $region17
    $region16: #{tpu_custom_call.1} parent=1 // pred_region
      %121 = dma.done [#allocation4], 128
    $region17: #{tpu_custom_call.1} parent=1 // pred_fallthru
      _
    %122 = vsyncpa [#allocation3], 1
    %123 = vsyncpa [#allocation4], 1

</llo_original>
